<compile_context>
chip_gen: v7x
topology: tpu7x:2x2x1
jax: 0.10.0
libtpu: 0.0.40
codegen_flags: <defaults>
</compile_context>

<pallas_src>
import functools

import jax
import jax.numpy as jnp
import numpy as np
from jax import lax
from jax.experimental import pallas as pl
from jax.experimental.pallas import tpu as pltpu

_LANE = 128
_PAD_UNIT = 8 * _LANE      # pad the flattened spatial axis to a multiple of this
_MAX_BLOCK_ROWS = 2048     # 2048 rows x 128 lanes = 256K pixels per block


def _pwce_kernel(cw_ref, x_ref, t_ref, w_ref, out_ref, acc_ref, *,
                 C, n_inner, n_blocks, block_rows, tail_rows, has_dup, has_cw):
    """Grid step (n, chunk, inner): accumulate one (block_rows, 128) pixel slab."""
    chunk = pl.program_id(1)
    inner = pl.program_id(2)
    step = chunk * n_inner + inner            # global spatial block index

    @pl.when(inner == 0)
    def _init():
        acc_ref[...] = jnp.zeros_like(acc_ref)

    t = t_ref[0].astype(jnp.int32)            # (block_rows, 128) target ids

    # Sweep 1: running channel max fused with the target-logit gather and the
    # (optional) class-weight gather.  All masks/selects are 32-bit.
    x0 = x_ref[0, 0].astype(jnp.float32)
    m = x0
    x_t = jnp.where(t == 0, x0, 0.0)
    if has_cw:
        cw_t = jnp.where(t == 0, cw_ref[0], 0.0)
    for c in range(1, C):                     # NOTE: unrolled; fine for typical C
        xc = x_ref[0, c].astype(jnp.float32)
        m = jnp.maximum(m, xc)
        x_t = jnp.where(t == c, xc, x_t)
        if has_cw:
            cw_t = jnp.where(t == c, cw_ref[c], cw_t)

    # Sweep 2: softmax denominator (block read twice total, not three times).
    den = jnp.exp(x_ref[0, 0].astype(jnp.float32) - m)
    for c in range(1, C):
        den = den + jnp.exp(x_ref[0, c].astype(jnp.float32) - m)
    lse = jnp.log(den) + m                    # logsumexp per pixel

    w = w_ref[0].astype(jnp.float32)          # per-pixel weights (native dtype in HBM)
    if has_cw:
        w = w * cw_t
    contrib = w * (lse - x_t)                 # == -w_eff * log_softmax(x)[target]

    def _accum(v):
        # Fold rows to an (8, 128) slab with VPU adds; the single cross-lane
        # reduce happens only once per chunk at finalize.
        acc_ref[...] += jnp.sum(v.reshape(block_rows // 8, 8, _LANE), axis=0)

    ragged = tail_rows != block_rows
    if ragged:
        @pl.when(step < n_blocks - 1)
        def _body():
            _accum(contrib)

        @pl.when(step == n_blocks - 1)
        def _tail():
            # Rows >= tail_rows of the last block are out of bounds (stale VMEM,
            # possibly NaN) -- discard with a select, never a multiply.
            row = lax.broadcasted_iota(jnp.int32, (block_rows, _LANE), 0)
            _accum(jnp.where(row < tail_rows, contrib, 0.0))
    elif has_dup:
        @pl.when(step < n_blocks)             # skip the clamped duplicate step
        def _body():
            _accum(contrib)
    else:
        _accum(contrib)

    @pl.when(inner == n_inner - 1)
    def _finalize():
        out_ref[...] = jnp.sum(acc_ref[...]).reshape(1, 1, 1, 1)


def _vmem_capacity_bytes():
    """Physical VMEM per core (generation-aware) with a conservative fallback."""
    try:
        cap = int(pltpu.get_tpu_info().vmem_capacity_bytes)
        if cap > 0:
            return cap
    except Exception:
        pass
    return 64 * 1024 * 1024


def _choose_block_rows(R_total, C, x_isz, t_isz, w_isz, pipe_budget):
    # Double-buffered streams + ~8 live f32 (rows, 128) temporaries in the kernel.
    bytes_per_row = _LANE * (2 * C * x_isz + 2 * t_isz + 2 * w_isz + 8 * 4)
    cap = (pipe_budget // bytes_per_row) // 32 * 32
    cap = max(32, min(_MAX_BLOCK_ROWS, cap))
    return R_total if R_total <= cap else cap


@functools.partial(jax.jit, static_argnames=("ignore_index", "block_rows"))
def pixelwise_cross_entropy_loss(logits, target, weights, class_weights=None,
                                 ignore_index=None, block_rows=None):
    """JAX/Pallas equivalent of PixelWiseCrossEntropyLoss.forward."""
    # TODO(synk): ignore_index branch of expand_as_one_hot not implemented.
    assert ignore_index is None
    N, C, D, H, W = logits.shape
    assert target.shape == (N, D, H, W) and weights.shape == (N, D, H, W)
    S = D * H * W

    x3 = logits.reshape(N, C, S)                   # free reshape, native dtype
    t2 = target.reshape(N, S).astype(jnp.int32)
    w2 = weights.reshape(N, S)                     # native dtype (bf16 stays bf16)

    # weights.unsqueeze(0).expand_as(input) is only valid for N == 1 or N == C;
    # for N == C the expanded weight at (n, c, p) is weights[c, p], and only the
    # target channel survives the one-hot.
    if N != 1:
        assert N == C, "weights.unsqueeze(0).expand_as(input) requires N==1 or N==C"
        w2 = jnp.take_along_axis(w2, t2, axis=0)

    # Narrow the target side stream to cut HBM traffic.
    if C <= 127:
        t2 = t2.astype(jnp.int8)
    elif C <= 32767:
        t2 = t2.astype(jnp.int16)

    # Pad the flattened spatial axis to a multiple of 8*128 so it can be viewed as
    # lane-dense (rows, 128) slabs.  Zero logits keep logsumexp finite and zero
    # weights make padded pixels contribute exactly 0 (no per-column mask needed).
    # Costs one copy only when S is not already aligned.
    S_pad = -(-S // _PAD_UNIT) * _PAD_UNIT
    if S_pad != S:
        pad = S_pad - S
        x3 = jnp.pad(x3, ((0, 0), (0, 0), (0, pad)))
        t2 = jnp.pad(t2, ((0, 0), (0, pad)))
        w2 = jnp.pad(w2, ((0, 0), (0, pad)))
    R_total = S_pad // _LANE

    x4 = x3.reshape(N, C, R_total, _LANE)
    t3 = t2.reshape(N, R_total, _LANE)
    w3 = w2.reshape(N, R_total, _LANE)

    has_cw = class_weights is not None
    cw = (class_weights.astype(jnp.float32) if has_cw
          else jnp.ones((C,), jnp.float32))

    # Generation-aware VMEM budget (v5e/v6e: 128 MiB physical, v7x: 64 MiB).
    vmem_limit = min(_vmem_capacity_bytes() // 2, 64 * 1024 * 1024)
    if block_rows is None:
        block_rows = _choose_block_rows(
            R_total, C, x4.dtype.itemsize, t3.dtype.itemsize, w3.dtype.itemsize,
            pipe_budget=(vmem_limit * 3) // 4)
    else:
        if block_rows >= R_total:
            block_rows = R_total
        else:
            block_rows = min(R_total, max(32, (block_rows // 32) * 32))

    n_blocks = -(-R_total // block_rows)
    # Two spatial chunks so both v7x TensorCores get work even when N == 1
    # ("parallel" axes are sharded across cores); harmless on v5e/v6e.
    n_chunks = 2 if n_blocks >= 2 else 1
    n_inner = -(-n_blocks // n_chunks)
    has_dup = n_chunks * n_inner != n_blocks
    tail_rows = R_total - (n_blocks - 1) * block_rows

    if has_dup:
        # The last grid step of the last chunk has no real block: clamp its DMA to
        # the (in-bounds) tail block and skip its accumulation inside the kernel.
        def _blk(c, s):
            return jnp.minimum(c * n_inner + s, n_blocks - 1)
    else:
        def _blk(c, s):
            return c * n_inner + s

    kernel = functools.partial(
        _pwce_kernel, C=C, n_inner=n_inner, n_blocks=n_blocks,
        block_rows=block_rows, tail_rows=tail_rows,
        has_dup=has_dup, has_cw=has_cw)

    bytes_accessed = (x4.size * x4.dtype.itemsize + t3.size * t3.dtype.itemsize
                      + w3.size * w3.dtype.itemsize + N * n_chunks * 4)

    partials = pl.pallas_call(
        kernel,
        out_shape=jax.ShapeDtypeStruct((N, n_chunks, 1, 1), jnp.float32),
        grid_spec=pltpu.PrefetchScalarGridSpec(
            num_scalar_prefetch=1,                       # class_weights -> SMEM
            grid=(N, n_chunks, n_inner),
            in_specs=[
                pl.BlockSpec((1, C, block_rows, _LANE),
                             lambda n, c, s, cw_ref: (n, 0, _blk(c, s), 0)),
                pl.BlockSpec((1, block_rows, _LANE),
                             lambda n, c, s, cw_ref: (n, _blk(c, s), 0)),
                pl.BlockSpec((1, block_rows, _LANE),
                             lambda n, c, s, cw_ref: (n, _blk(c, s), 0)),
            ],
            out_specs=pl.BlockSpec((1, 1, 1, 1),
                                   lambda n, c, s, cw_ref: (n, c, 0, 0)),
            scratch_shapes=[pltpu.VMEM((8, _LANE), jnp.float32)],
        ),
        compiler_params=pltpu.CompilerParams(
            dimension_semantics=("parallel", "parallel", "arbitrary"),
            vmem_limit_bytes=vmem_limit),
        cost_estimate=pl.CostEstimate(
            flops=N * S_pad * (6 * C + 10),
            transcendentals=N * S_pad * (C + 1),
            bytes_accessed=bytes_accessed),
    )(cw, x4, t3, w3)

    # .mean() over all N*C*D*H*W elements of the PyTorch `result` tensor.
    return jnp.sum(partials) / jnp.float32(N * C * D * H * W)


def _reference_loss(logits, target, weights, class_weights=None):
    """Pure-JAX reference mirroring the PyTorch forward."""
    N, C = logits.shape[:2]
    log_probs = jax.nn.log_softmax(logits.astype(jnp.float32), axis=1)
    one_hot = jax.nn.one_hot(target, C, axis=1, dtype=jnp.float32)
    w_exp = jnp.broadcast_to(weights[None, ...].astype(jnp.float32), logits.shape)
    cw = (jnp.ones((C,), jnp.float32) if class_weights is None
          else class_weights.astype(jnp.float32))
    cw = cw.reshape(1, C, 1, 1, 1)
    result = -(cw * w_exp) * one_hot * log_probs
    return result.mean()


if __name__ == "__main__":
    key = jax.random.PRNGKey(0)
    k1, k2, k3, k4 = jax.random.split(key, 4)

    def _check(loss, ref, rtol, atol=1e-6):
        np.testing.assert_allclose(np.asarray(loss), np.asarray(ref),
                                   rtol=rtol, atol=atol)

    # Case 1: common N==1 path, f32 logits, S not a multiple of 128 (exercises pad).
    N, C, D, H, W = 1, 4, 4, 8, 10
    logits = jax.random.normal(k1, (N, C, D, H, W), dtype=jnp.float32)
    target = jax.random.randint(k2, (N, D, H, W), 0, C, dtype=jnp.int32)
    weights = jax.random.uniform(k3, (N, D, H, W), dtype=jnp.float32)
    class_w = jax.random.uniform(k4, (C,), dtype=jnp.float32) + 0.5

    loss = jax.block_until_ready(pixelwise_cross_entropy_loss(logits, target, weights))
    _check(loss, _reference_loss(logits, target, weights), rtol=1e-5)

    loss = jax.block_until_ready(
        pixelwise_cross_entropy_loss(logits, target, weights, class_w))
    _check(loss, _reference_loss(logits, target, weights, class_w), rtol=1e-5)

    # Case 2: N == C path (weights batch dim aliases the channel dim, as implied
    # by weights.unsqueeze(0).expand_as(input)).
    N2, C2, D2, H2, W2 = 4, 4, 2, 8, 8
    logits2 = jax.random.normal(k1, (N2, C2, D2, H2, W2), dtype=jnp.float32)
    target2 = jax.random.randint(k2, (N2, D2, H2, W2), 0, C2, dtype=jnp.int32)
    weights2 = jax.random.uniform(k3, (N2, D2, H2, W2), dtype=jnp.float32)
    class_w2 = jax.random.uniform(k4, (C2,), dtype=jnp.float32) + 0.5

    loss = jax.block_until_ready(
        pixelwise_cross_entropy_loss(logits2, target2, weights2, class_w2))
    _check(loss, _reference_loss(logits2, target2, weights2, class_w2), rtol=1e-5)

    # Case 3: bf16 logits, int8 targets, padded + ragged spatial tail, two
    # parallel spatial chunks and a clamped duplicate tail step (block_rows=64
    # forces 3 spatial blocks over 160 rows).
    N3, C3, D3, H3, W3 = 1, 3, 5, 32, 125
    logits3 = jax.random.normal(k1, (N3, C3, D3, H3, W3),
                                dtype=jnp.float32).astype(jnp.bfloat16)
    target3 = jax.random.randint(k2, (N3, D3, H3, W3), 0, C3, dtype=jnp.int32)
    weights3 = jax.random.uniform(k3, (N3, D3, H3, W3), dtype=jnp.float32)
    class_w3 = jax.random.uniform(k4, (C3,), dtype=jnp.float32) + 0.5

    loss = jax.block_until_ready(
        pixelwise_cross_entropy_loss(logits3, target3, weights3, class_w3,
                                     block_rows=64))
    _check(loss, _reference_loss(logits3, target3, weights3, class_w3), rtol=1e-4)

    print("KERNEL_OK")
</pallas_src>

<mosaic_0001>
module attributes {stable_mosaic.version = 11 : i64} {
  func.func @_pwce_kernel(%arg0: i32, %arg1: i32, %arg2: i32, %arg3: memref<4xf32, #tpu.memory_space<smem>>, %arg4: memref<1x4x8x128xf32, #tpu.memory_space<vmem>>, %arg5: memref<1x8x128xi8, #tpu.memory_space<vmem>>, %arg6: memref<1x8x128xf32, #tpu.memory_space<vmem>>, %arg7: memref<1x1x1x1xf32, #tpu.memory_space<vmem>>, %arg8: memref<8x128xf32, #tpu.memory_space<vmem>>) attributes {dimension_semantics = [#tpu.dimension_semantics<parallel>, #tpu.dimension_semantics<parallel>, #tpu.dimension_semantics<arbitrary>], iteration_bounds = array<i64: 1, 1, 1>, scalar_prefetch = 1 : i64, scratch_operands = 1 : i64, tpu.core_type = #tpu.core_type<tc>, window_params = [{transform_indices = @transform_0, window_bounds = array<i64: 1, 4, 8, 128>}, {transform_indices = @transform_1, window_bounds = array<i64: 1, 8, 128>}, {transform_indices = @transform_2, window_bounds = array<i64: 1, 8, 128>}, {transform_indices = @transform_3, window_bounds = array<i64: 1, 1, 1, 1>}]} {
    %c0_i32 = arith.constant 0 : i32
    %0 = arith.cmpi eq, %arg2, %c0_i32 : i32
    %1 = arith.extui %0 : i1 to i32
    %c0_i32_0 = arith.constant 0 : i32
    %2 = arith.cmpi ne, %1, %c0_i32_0 : i32
    scf.if %2 {
      %cst_43 = arith.constant 0.000000e+00 : f32
      %63 = vector.broadcast %cst_43 : f32 to vector<8x128xf32>
      %c0_44 = arith.constant 0 : index
      %c0_45 = arith.constant 0 : index
      %64 = vector.load %arg8[%c0_44, %c0_45] : memref<8x128xf32, #tpu.memory_space<vmem>>, vector<8x128xf32>
      tpu.vector_store %arg8[%c0_44, %c0_45], %63 {strides = array<i32>} : memref<8x128xf32, #tpu.memory_space<vmem>>, vector<8x128xf32>,
    } else {
    }
    %c0 = arith.constant 0 : index
    %c0_1 = arith.constant 0 : index
    %c0_2 = arith.constant 0 : index
    %3 = vector.load %arg5[%c0, %c0_1, %c0_2] : memref<1x8x128xi8, #tpu.memory_space<vmem>>, vector<1x8x128xi8>
    %4 = vector.shape_cast %3 : vector<1x8x128xi8> to vector<8x128xi8>
    %5 = arith.extsi %4 : vector<8x128xi8> to vector<8x128xi32>
    %c0_3 = arith.constant 0 : index
    %c0_4 = arith.constant 0 : index
    %c0_5 = arith.constant 0 : index
    %c0_6 = arith.constant 0 : index
    %6 = vector.load %arg4[%c0_3, %c0_4, %c0_5, %c0_6] : memref<1x4x8x128xf32, #tpu.memory_space<vmem>>, vector<1x1x8x128xf32>
    %7 = vector.shape_cast %6 : vector<1x1x8x128xf32> to vector<8x128xf32>
    %c0_i32_7 = arith.constant 0 : i32
    %8 = vector.broadcast %c0_i32_7 : i32 to vector<8x128xi32>
    %9 = arith.cmpi eq, %5, %8 : vector<8x128xi32>
    %cst = arith.constant 0.000000e+00 : f32
    %10 = vector.broadcast %cst : f32 to vector<8x128xf32>
    %11 = arith.select %9, %7, %10 : vector<8x128xi1>, vector<8x128xf32>
    %c0_8 = arith.constant 0 : index
    %c1 = arith.constant 1 : index
    %c0_9 = arith.constant 0 : index
    %c0_10 = arith.constant 0 : index
    %12 = vector.load %arg4[%c0_8, %c1, %c0_9, %c0_10] : memref<1x4x8x128xf32, #tpu.memory_space<vmem>>, vector<1x1x8x128xf32>
    %13 = vector.shape_cast %12 : vector<1x1x8x128xf32> to vector<8x128xf32>
    %14 = arith.maximumf %7, %13 : vector<8x128xf32>
    %c1_i32 = arith.constant 1 : i32
    %15 = vector.broadcast %c1_i32 : i32 to vector<8x128xi32>
    %16 = arith.cmpi eq, %5, %15 : vector<8x128xi32>
    %17 = arith.select %16, %13, %11 : vector<8x128xi1>, vector<8x128xf32>
    %c0_11 = arith.constant 0 : index
    %c2 = arith.constant 2 : index
    %c0_12 = arith.constant 0 : index
    %c0_13 = arith.constant 0 : index
    %18 = vector.load %arg4[%c0_11, %c2, %c0_12, %c0_13] : memref<1x4x8x128xf32, #tpu.memory_space<vmem>>, vector<1x1x8x128xf32>
    %19 = vector.shape_cast %18 : vector<1x1x8x128xf32> to vector<8x128xf32>
    %20 = arith.maximumf %14, %19 : vector<8x128xf32>
    %c2_i32 = arith.constant 2 : i32
    %21 = vector.broadcast %c2_i32 : i32 to vector<8x128xi32>
    %22 = arith.cmpi eq, %5, %21 : vector<8x128xi32>
    %23 = arith.select %22, %19, %17 : vector<8x128xi1>, vector<8x128xf32>
    %c0_14 = arith.constant 0 : index
    %c3 = arith.constant 3 : index
    %c0_15 = arith.constant 0 : index
    %c0_16 = arith.constant 0 : index
    %24 = vector.load %arg4[%c0_14, %c3, %c0_15, %c0_16] : memref<1x4x8x128xf32, #tpu.memory_space<vmem>>, vector<1x1x8x128xf32>
    %25 = vector.shape_cast %24 : vector<1x1x8x128xf32> to vector<8x128xf32>
    %26 = arith.maximumf %20, %25 : vector<8x128xf32>
    %c3_i32 = arith.constant 3 : i32
    %27 = vector.broadcast %c3_i32 : i32 to vector<8x128xi32>
    %28 = arith.cmpi eq, %5, %27 : vector<8x128xi32>
    %29 = arith.select %28, %25, %23 : vector<8x128xi1>, vector<8x128xf32>
    %c0_17 = arith.constant 0 : index
    %c0_18 = arith.constant 0 : index
    %c0_19 = arith.constant 0 : index
    %c0_20 = arith.constant 0 : index
    %30 = vector.load %arg4[%c0_17, %c0_18, %c0_19, %c0_20] : memref<1x4x8x128xf32, #tpu.memory_space<vmem>>, vector<1x1x8x128xf32>
    %31 = vector.shape_cast %30 : vector<1x1x8x128xf32> to vector<8x128xf32>
    %32 = arith.subf %31, %26 : vector<8x128xf32>
    %33 = math.exp %32 : vector<8x128xf32>
    %c0_21 = arith.constant 0 : index
    %c1_22 = arith.constant 1 : index
    %c0_23 = arith.constant 0 : index
    %c0_24 = arith.constant 0 : index
    %34 = vector.load %arg4[%c0_21, %c1_22, %c0_23, %c0_24] : memref<1x4x8x128xf32, #tpu.memory_space<vmem>>, vector<1x1x8x128xf32>
    %35 = vector.shape_cast %34 : vector<1x1x8x128xf32> to vector<8x128xf32>
    %36 = arith.subf %35, %26 : vector<8x128xf32>
    %37 = math.exp %36 : vector<8x128xf32>
    %38 = arith.addf %33, %37 : vector<8x128xf32>
    %c0_25 = arith.constant 0 : index
    %c2_26 = arith.constant 2 : index
    %c0_27 = arith.constant 0 : index
    %c0_28 = arith.constant 0 : index
    %39 = vector.load %arg4[%c0_25, %c2_26, %c0_27, %c0_28] : memref<1x4x8x128xf32, #tpu.memory_space<vmem>>, vector<1x1x8x128xf32>
    %40 = vector.shape_cast %39 : vector<1x1x8x128xf32> to vector<8x128xf32>
    %41 = arith.subf %40, %26 : vector<8x128xf32>
    %42 = math.exp %41 : vector<8x128xf32>
    %43 = arith.addf %38, %42 : vector<8x128xf32>
    %c0_29 = arith.constant 0 : index
    %c3_30 = arith.constant 3 : index
    %c0_31 = arith.constant 0 : index
    %c0_32 = arith.constant 0 : index
    %44 = vector.load %arg4[%c0_29, %c3_30, %c0_31, %c0_32] : memref<1x4x8x128xf32, #tpu.memory_space<vmem>>, vector<1x1x8x128xf32>
    %45 = vector.shape_cast %44 : vector<1x1x8x128xf32> to vector<8x128xf32>
    %46 = arith.subf %45, %26 : vector<8x128xf32>
    %47 = math.exp %46 : vector<8x128xf32>
    %48 = arith.addf %43, %47 : vector<8x128xf32>
    %49 = math.log %48 : vector<8x128xf32>
    %50 = arith.addf %49, %26 : vector<8x128xf32>
    %c0_33 = arith.constant 0 : index
    %c0_34 = arith.constant 0 : index
    %c0_35 = arith.constant 0 : index
    %51 = vector.load %arg6[%c0_33, %c0_34, %c0_35] : memref<1x8x128xf32, #tpu.memory_space<vmem>>, vector<1x8x128xf32>
    %52 = vector.shape_cast %51 : vector<1x8x128xf32> to vector<8x128xf32>
    %53 = arith.subf %50, %29 : vector<8x128xf32>
    %54 = arith.mulf %52, %53 : vector<8x128xf32>
    %c0_36 = arith.constant 0 : index
    %c0_37 = arith.constant 0 : index
    %55 = vector.load %arg8[%c0_36, %c0_37] : memref<8x128xf32, #tpu.memory_space<vmem>>, vector<8x128xf32>
    %56 = vector.shape_cast %54 : vector<8x128xf32> to vector<1x8x128xf32>
    %cst_38 = arith.constant dense<0.000000e+00> : vector<8x128xf32>
    %57 = vector.multi_reduction <add>, %56, %cst_38 [0] : vector<1x8x128xf32> to vector<8x128xf32>
    %58 = arith.addf %55, %57 : vector<8x128xf32>
    %c0_39 = arith.constant 0 : index
    %c0_40 = arith.constant 0 : index
    %59 = vector.load %arg8[%c0_39, %c0_40] : memref<8x128xf32, #tpu.memory_space<vmem>>, vector<8x128xf32>
    tpu.vector_store %arg8[%c0_39, %c0_40], %58 {strides = array<i32>} : memref<8x128xf32, #tpu.memory_space<vmem>>, vector<8x128xf32>,
    %c0_i32_41 = arith.constant 0 : i32
    %60 = arith.cmpi eq, %arg2, %c0_i32_41 : i32
    %61 = arith.extui %60 : i1 to i32
    %c0_i32_42 = arith.constant 0 : i32
    %62 = arith.cmpi ne, %61, %c0_i32_42 : i32
    scf.if %62 {
      %c0_43 = arith.constant 0 : index
      %c0_44 = arith.constant 0 : index
      %63 = vector.load %arg8[%c0_43, %c0_44] : memref<8x128xf32, #tpu.memory_space<vmem>>, vector<8x128xf32>
      %64 = vector.shape_cast %63 : vector<8x128xf32> to vector<1x8x128xf32>
      %cst_45 = arith.constant dense<0.000000e+00> : vector<1xf32>
      %65 = vector.multi_reduction <add>, %64, %cst_45 [1, 2] : vector<1x8x128xf32> to vector<1xf32>
      %66 = vector.shape_cast %65 : vector<1xf32> to vector<1x1x1xf32>
      %67 = vector.extract %66[0, 0, 0] : f32 from vector<1x1x1xf32>
      %68 = vector.broadcast %67 : f32 to vector<1x1x1x1xf32>
      %c0_46 = arith.constant 0 : index
      %c0_47 = arith.constant 0 : index
      %c0_48 = arith.constant 0 : index
      %c0_49 = arith.constant 0 : index
      %69 = vector.load %arg7[%c0_46, %c0_47, %c0_48, %c0_49] : memref<1x1x1x1xf32, #tpu.memory_space<vmem>>, vector<1x1x1x1xf32>
      tpu.vector_store %arg7[%c0_46, %c0_47, %c0_48, %c0_49], %68 {strides = array<i32>} : memref<1x1x1x1xf32, #tpu.memory_space<vmem>>, vector<1x1x1x1xf32>,
    } else {
    }
    return
  }
  func.func @transform_0(%arg0: i32, %arg1: i32, %arg2: i32, %arg3: memref<4xf32, #tpu.memory_space<smem>>) -> (i32, i32, i32, i32) {
    %c1_i32 = arith.constant 1 : i32
    %0 = arith.muli %arg1, %c1_i32 : i32
    %1 = arith.addi %0, %arg2 : i32
    %c0_i32 = arith.constant 0 : i32
    %c0_i32_0 = arith.constant 0 : i32
    %c0_i32_1 = arith.constant 0 : i32
    return %arg0, %c0_i32, %1, %c0_i32_0 : i32, i32, i32, i32
  }
  func.func @transform_1(%arg0: i32, %arg1: i32, %arg2: i32, %arg3: memref<4xf32, #tpu.memory_space<smem>>) -> (i32, i32, i32) {
    %c1_i32 = arith.constant 1 : i32
    %0 = arith.muli %arg1, %c1_i32 : i32
    %1 = arith.addi %0, %arg2 : i32
    %c0_i32 = arith.constant 0 : i32
    %c0_i32_0 = arith.constant 0 : i32
    return %arg0, %1, %c0_i32 : i32, i32, i32
  }
  func.func @transform_2(%arg0: i32, %arg1: i32, %arg2: i32, %arg3: memref<4xf32, #tpu.memory_space<smem>>) -> (i32, i32, i32) {
    %c1_i32 = arith.constant 1 : i32
    %0 = arith.muli %arg1, %c1_i32 : i32
    %1 = arith.addi %0, %arg2 : i32
    %c0_i32 = arith.constant 0 : i32
    %c0_i32_0 = arith.constant 0 : i32
    return %arg0, %1, %c0_i32 : i32, i32, i32
  }
  func.func @transform_3(%arg0: i32, %arg1: i32, %arg2: i32, %arg3: memref<4xf32, #tpu.memory_space<smem>>) -> (i32, i32, i32, i32) {
    %c0_i32 = arith.constant 0 : i32
    %c0_i32_0 = arith.constant 0 : i32
    %c0_i32_1 = arith.constant 0 : i32
    return %arg0, %arg1, %c0_i32, %c0_i32_0 : i32, i32, i32, i32
  }
}

</mosaic_0001>

<llo_original>
// kernel: pixelwise_cross_entropy_loss.1
$region0: #{pixelwise_cross_entropy_loss.1}
  #allocation0 [shape = 'u32[]', space=smem, size = 0x4, offset = 0x4, fixed_abs, tag = 'smem constant byte address 0x4 - core index']
  #allocation1 [shape = 'u32[144,128]{1,0:T(1,128)}', space=vmem, size = 0x12000, scoped, tag = 'internal scratch']
  #allocation2 [shape = 'f32[8,128]{1,0:T(8,128)}', space=vmem, size = 0x1000, scoped, tag = 'scratch operand']
  #allocation3 [shape = 's32[1]{0}', space=sflag, size = 0x4, scoped, tag = 'scoped memory for pixelwise_cross_entropy_loss.1']
  #allocation4 [shape = 'u8[512]{0}', space=smem, size = 0x200, scoped, tag = 'prefetched SMEM operand 0']
  %s0 = inlined_call_operand.vmem [shape: f32[4], index: 0, kind: input, shape index: {}]
  %s1 = inlined_call_operand.vmem [shape: f32[1,4,8,128], index: 1, kind: input, shape index: {}]
  %s2 = inlined_call_operand.vmem [shape: s8[1,8,128], index: 2, kind: input, shape index: {}]
  %s3 = inlined_call_operand.vmem [shape: f32[1,8,128], index: 3, kind: input, shape index: {}]
  %s4 = inlined_call_operand.hbm [shape: f32[1,1,1,1], index: 4, kind: output, shape index: {}]
  %s5 = sld [smem:[#allocation0]]
  $region30: #{pixelwise_cross_entropy_loss.1} parent=0
    _
  %s7 = ssub.s32 1, %s5
  %s8 = scalar_select 0, %s7, %s5
  %s9 = sshll.u32 %s0, 4
  %s10 = int_to_ptr.vmem [resolvable:$true] %s9
  %12 = dma.vmem_to_smem %s10, 16, [#allocation4], [#allocation3]
  %13 = dma.done [#allocation3], 16
  %14 = sfence
  $region1: #{pixelwise_cross_entropy_loss.1} parent=0
    #allocation5 [shape = 'u8[512]{0}', space=vmem, size = 0x400, scoped, tag = 'output window, operand 0, single buffered']
    #allocation6 [shape = 's32[1]{0}', space=sflag, size = 0x4, scoped, tag = 'scoped memory for pixelwise_cross_entropy_loss.1']
    %15 = vsyncpa [#allocation6], 0
    // Predicated region
    $region2: #{pixelwise_cross_entropy_loss.1} parent=1 // pred_check
      _
    $region3: #{pixelwise_cross_entropy_loss.1} parent=1 // pred_check_branch
      %17 = sbr.rel (0) target = $region5
    $region4: #{pixelwise_cross_entropy_loss.1} parent=1 // pred_region
      %s18 = sadd.s32 0, 0
      %p19 = scmp.lt.s32.totalorder %s18, 0
      %s20 = scalar_select %p19, %s18, 0
      %s21 = smul.addr %s20, 8
      %s22 = scalar_lea.vmem %s1, %s21
      %s23 = sadd.s32 0, 0
    $region5: #{pixelwise_cross_entropy_loss.1} parent=1 // pred_fallthru
      _
    // Predicated region
    $region6: #{pixelwise_cross_entropy_loss.1} parent=1 // pred_check
      _
    $region7: #{pixelwise_cross_entropy_loss.1} parent=1 // pred_check_branch
      %25 = sbr.rel (0) target = $region9
    $region8: #{pixelwise_cross_entropy_loss.1} parent=1 // pred_region
      %s26 = sadd.s32 0, 0
      %p27 = scmp.lt.s32.totalorder %s26, 0
      %s28 = scalar_select %p27, %s26, 0
      %s29 = smul.addr %s28, 2
      %s30 = scalar_lea.vmem %s2, %s29
      %s31 = sadd.s32 0, 0
    $region9: #{pixelwise_cross_entropy_loss.1} parent=1 // pred_fallthru
      _
    // Predicated region
    $region10: #{pixelwise_cross_entropy_loss.1} parent=1 // pred_check
      _
    $region11: #{pixelwise_cross_entropy_loss.1} parent=1 // pred_check_branch
      %33 = sbr.rel (0) target = $region13
    $region12: #{pixelwise_cross_entropy_loss.1} parent=1 // pred_region
      %s34 = sadd.s32 0, 0
      %p35 = scmp.lt.s32.totalorder %s34, 0
      %s36 = scalar_select %p35, %s34, 0
      %s37 = smul.addr %s36, 8
      %s38 = scalar_lea.vmem %s3, %s37
      %s39 = sadd.s32 0, 0
    $region13: #{pixelwise_cross_entropy_loss.1} parent=1 // pred_fallthru
      _
    %s40 = sadd.s32 0, 0
    %p41 = scmp.lt.s32.totalorder %s40, 0
    %s42 = scalar_select %p41, %s40, 0
    %s43 = smul.addr %s42, 8
    %s44 = scalar_lea.vmem %s1, %s43
    %s45 = sadd.s32 0, 0
    %p46 = scmp.lt.s32.totalorder %s45, 0
    %s47 = scalar_select %p46, %s45, 0
    %s48 = smul.addr %s47, 2
    %s49 = scalar_lea.vmem %s2, %s48
    %s50 = sadd.s32 0, 0
    %p51 = scmp.lt.s32.totalorder %s50, 0
    %s52 = scalar_select %p51, %s50, 0
    %s53 = smul.addr %s52, 8
    %s54 = scalar_lea.vmem %s3, %s53
    %s55 = sadd.s32 0, 0
    %p56 = scmp.lt.s32.totalorder %s55, 0
    %s57 = scalar_select %p56, %s55, 0
    %s58 = smul.addr %s57, 8
    %s59 = scalar_lea.vmem %s1, %s58
    %s60 = sadd.s32 0, 0
    %s61 = sadd.s32 0, 0
    %p62 = scmp.lt.s32.totalorder %s61, 0
    %s63 = scalar_select %p62, %s61, 0
    %s64 = smul.addr %s63, 2
    %s65 = scalar_lea.vmem %s2, %s64
    %s66 = sadd.s32 0, 0
    %s67 = sadd.s32 0, 0
    %p68 = scmp.lt.s32.totalorder %s67, 0
    %s69 = scalar_select %p68, %s67, 0
    %s70 = smul.addr %s69, 8
    %s71 = scalar_lea.vmem %s3, %s70
    %s72 = sadd.s32 0, 0
    %p73 = scmp.eq.s32.totalorder 0, 0
    // Predicated region
    $region14: #{pixelwise_cross_entropy_loss.1} parent=1 // pred_check
      %p74 = pneg %p73
    $region15: #{pixelwise_cross_entropy_loss.1} parent=1 // pred_check_branch
      %76 = sbr.rel (%p74) target = $region17
    $region16: #{pixelwise_cross_entropy_loss.1} parent=1 // pred_region
      %77 = vst [vmem:[#allocation2] sm:$0xff] 0.0
    $region17: #{pixelwise_cross_entropy_loss.1} parent=1 // pred_fallthru
      _
    %v78 = vld [vmem:[%s65] sm:$0x3]
    %v79 = vunpack.c.0.s8 %v78
    %v80 = vld [vmem:[%s59] sm:$0xff]
    %vm81 = vcmp.eq.s32.totalorder %v79, 0
    %v82 = vsel %vm81, %v80, 0.0
    %s83 = scalar_lea.vmem %s59, 8
    %v84 = vld [vmem:[%s83] sm:$0xff]
    %v85 = vmax.f32 %v80, %v84
    %vm86 = vcmp.eq.s32.totalorder %v79, 1
    %v87 = vsel %vm86, %v84, %v82
    %s88 = scalar_lea.vmem %s59, 16
    %v89 = vld [vmem:[%s88] sm:$0xff]
    %v90 = vmax.f32 %v85, %v89
    %vm91 = vcmp.eq.s32.totalorder %v79, 2
    %v92 = vsel %vm91, %v89, %v87
    %s93 = scalar_lea.vmem %s59, 24
    %v94 = vld [vmem:[%s93] sm:$0xff]
    %v95 = vmax.f32 %v90, %v94
    %vm96 = vcmp.eq.s32.totalorder %v79, 3
    %v97 = vsel %vm96, %v94, %v92
    %v98 = vsub.f32 %v80, %v95
    %v99 = vmul.f32 %v98, 1.442695
    %v100 = vpow.pop %v99
    %v101 = vsub.f32 %v84, %v95
    %v102 = vmul.f32 %v101, 1.442695
    %v103 = vpow.pop %v102
    %v104 = vadd.f32 %v100, %v103
    %v105 = vsub.f32 %v89, %v95
    %v106 = vmul.f32 %v105, 1.442695
    %v107 = vpow.pop %v106
    %v108 = vadd.f32 %v104, %v107
    %v109 = vsub.f32 %v94, %v95
    %v110 = vmul.f32 %v109, 1.442695
    %v111 = vpow.pop %v110
    %v112 = vadd.f32 %v108, %v111
    %v113 = vlog2.pop %v112
    %v114 = vmul.f32 %v113, 0.6931472
    %v115 = vadd.f32 %v114, %v95
    %v116 = vld [vmem:[%s71] sm:$0xff]
    %v117 = vsub.f32 %v115, %v97
    %v118 = vmul.f32 %v116, %v117
    %v119 = vld [vmem:[#allocation2] sm:$0xff]
    %v120 = vadd.f32 %v118, 0.0
    %v121 = vadd.f32 %v119, %v120
    %122 = vst [vmem:[#allocation2] sm:$0xff] %v121
    // Predicated region
    $region18: #{pixelwise_cross_entropy_loss.1} parent=1 // pred_check
      %p123 = pneg %p73
    $region19: #{pixelwise_cross_entropy_loss.1} parent=1 // pred_check_branch
      %125 = sbr.rel (%p123) target = $region21
    $region20: #{pixelwise_cross_entropy_loss.1} parent=1 // pred_region
      %v126 = vld [vmem:[#allocation2] sm:$0xff]
      %127 = vadd.xlane.f32.xlu0 %v126
      %v128 = vpop.xlane.xlu0 %127
      %v129 = vrot.slane %v128, 4
      %v130 = vadd.f32 %v128, %v129
      %v131 = vrot.slane %v130, 2
      %v132 = vadd.f32 %v130, %v131
      %v133 = vrot.slane %v132, 1
      %v134 = vadd.f32 %v132, %v133
      %s135 = vtos %v134
      %v136 = vstv %s135
      %vm137 = vcmask 0
      %138 = vst.msk [vmem:[#allocation5] sm:$0x1] %vm137, %v136
    $region21: #{pixelwise_cross_entropy_loss.1} parent=1 // pred_fallthru
      _
    // Predicated region
    $region22: #{pixelwise_cross_entropy_loss.1} parent=1 // pred_check
      _
    $region23: #{pixelwise_cross_entropy_loss.1} parent=1 // pred_check_branch
      %140 = sbr.rel (0) target = $region25
    $region24: #{pixelwise_cross_entropy_loss.1} parent=1 // pred_region
      %s142 = ssub.s32 16, 16
      %143 = vsyncadd [#allocation6], %s142
      %s145 = sshll.u32 [#allocation5], 4
      %s146 = int_to_ptr.vmem [resolvable:$true] %s145
      %148 = dma.vmem_to_hbm [thread:$0]  %s146, 16, %s4, [#allocation6]
    $region25: #{pixelwise_cross_entropy_loss.1} parent=1 // pred_fallthru
      _
    // Predicated region
    $region26: #{pixelwise_cross_entropy_loss.1} parent=1 // pred_check
      _
    $region27: #{pixelwise_cross_entropy_loss.1} parent=1 // pred_check_branch
      %150 = sbr.rel (0) target = $region29
    $region28: #{pixelwise_cross_entropy_loss.1} parent=1 // pred_region
      %151 = dma.done [#allocation6], 16
    $region29: #{pixelwise_cross_entropy_loss.1} parent=1 // pred_fallthru
      _
    %152 = vsyncpa [#allocation6], 1

</llo_original>
